<compile_context>
chip_gen: v6e
topology: v6e:2x2x1
jax: 0.10.0
libtpu: 0.0.40
codegen_flags: <defaults>
</compile_context>

<pallas_src>
import jax
import jax.numpy as jnp
from jax import lax
from jax.experimental import pallas as pl
from jax.experimental.pallas import tpu as pltpu


# ----------------------------------------------------------------------------
# Fused kernel: build A_hat -> GCN(relu) -> GCN -> gather -> Linear(relu) -> Linear
# ----------------------------------------------------------------------------
def fused_forward_kernel(edges_ref, x_ref, w1_ref, w2_ref, pw1_ref, vec_ref, o_ref):
    f32 = jnp.float32
    bf16 = jnp.bfloat16

    n = x_ref.shape[0]
    e_pad = edges_ref.shape[1]
    h2 = w2_ref.shape[0]          # 2 * hidden_channels
    h = w2_ref.shape[1]           # hidden_channels

    # ---- one-hot edge matrices (transposed layout (N, E_pad)), built in-kernel ----
    edges = edges_ref[...]                                       # (2, E_pad) int32
    node_iota = lax.broadcasted_iota(jnp.int32, (n, e_pad), 0)
    g_src = (edges[0:1, :] == node_iota).astype(bf16)            # (N, E_pad)
    g_dst = (edges[1:2, :] == node_iota).astype(bf16)            # (N, E_pad)

    # ---- adjacency with self-loops + symmetric normalization factors ----
    # adj[d, s] = #edges (s -> d)   (exact small-integer counts)
    adj = lax.dot_general(g_dst, g_src, (((1,), (1,)), ((), ())),
                          preferred_element_type=f32)            # (N, N) f32
    row_i = lax.broadcasted_iota(jnp.int32, (n, n), 0)
    col_i = lax.broadcasted_iota(jnp.int32, (n, n), 1)
    adj = adj + (row_i == col_i).astype(f32)                     # A + I
    deg = jnp.sum(adj, axis=1, keepdims=True)                    # (N, 1) in-degree + 1
    dinv = lax.rsqrt(deg)                                        # (N, 1) f32
    adj_bf = adj.astype(bf16)

    def aggregate(m_f32):
        # D^-1/2 (A+I) D^-1/2 @ M  ==  dinv * ((A+I) @ (dinv * M))
        return dinv * jnp.dot(adj_bf, (dinv * m_f32).astype(bf16),
                              preferred_element_type=f32)

    # ---- GCN layer 1: h1 = ReLU(A_hat @ (X @ W1) + b1) ----
    xw = jnp.dot(x_ref[...], w1_ref[...], preferred_element_type=f32)   # (N, 2h)
    h1 = jnp.maximum(aggregate(xw) + vec_ref[:, 0:h2], 0.0)

    # ---- GCN layer 2: z = A_hat @ (h1 @ W2) + b2 ----
    hw = jnp.dot(h1.astype(bf16), w2_ref[...], preferred_element_type=f32)
    z = aggregate(hw) + vec_ref[:, h2:h2 + h]                    # (N, h) f32

    # ---- edge gather via (transposed) one-hot matmuls on the MXU ----
    z_bf = z.astype(bf16)
    z_src = lax.dot_general(g_src, z_bf, (((0,), (0,)), ((), ())),
                            preferred_element_type=f32)          # (E_pad, h)
    z_dst = lax.dot_general(g_dst, z_bf, (((0,), (0,)), ((), ())),
                            preferred_element_type=f32)          # (E_pad, h)

    # ---- predictor: [z_src|z_dst] @ W1 + b1 == z_src@W1[:h] + z_dst@W1[h:] + b1 ----
    p = (jnp.dot(z_src.astype(bf16), pw1_ref[0:h, :], preferred_element_type=f32)
         + jnp.dot(z_dst.astype(bf16), pw1_ref[h:, :], preferred_element_type=f32)
         + vec_ref[:, h2 + h:h2 + 2 * h])
    p = jnp.maximum(p, 0.0)                                      # (E_pad, h) f32

    # ---- final Linear(h, 1), lane-dense (1, E_pad), bf16 MXU operands ----
    w2t = vec_ref[:, h2 + 2 * h:h2 + 3 * h].astype(bf16)         # (1, h)
    scores = lax.dot_general(w2t, p.astype(bf16), (((1,), (1,)), ((), ())),
                             preferred_element_type=f32)         # (1, E_pad)
    o_ref[...] = scores + vec_ref[:, h2 + 3 * h:h2 + 3 * h + 1]


# ----------------------------------------------------------------------------
# Parameter init (matches the PyTorch module's layer shapes)
# ----------------------------------------------------------------------------
def init_params(key, in_channels, hidden_channels):
    h = hidden_channels
    ks = jax.random.split(key, 8)
    scale = 0.1
    return {
        # encoder: GCNConv(in, 2h) -> ReLU -> GCNConv(2h, h)
        "gcn1_w": scale * jax.random.normal(ks[0], (in_channels, 2 * h), jnp.float32),
        "gcn1_b": scale * jax.random.normal(ks[1], (2 * h,), jnp.float32),
        "gcn2_w": scale * jax.random.normal(ks[2], (2 * h, h), jnp.float32),
        "gcn2_b": scale * jax.random.normal(ks[3], (h,), jnp.float32),
        # predictor: Linear(2h, h) -> ReLU -> Linear(h, 1)
        "lin1_w": scale * jax.random.normal(ks[4], (2 * h, h), jnp.float32),
        "lin1_b": scale * jax.random.normal(ks[5], (h,), jnp.float32),
        "lin2_w": scale * jax.random.normal(ks[6], (h, 1), jnp.float32),
        "lin2_b": scale * jax.random.normal(ks[7], (1,), jnp.float32),
    }


# ----------------------------------------------------------------------------
# Wrapper: pad edges, concat vector params, pre-cast to bf16, one pallas_call
# ----------------------------------------------------------------------------
def mlp_link_predictor_forward(params, x, edge_index):
    """z = GCN(x, edge_index); scores = MLP([z[src] | z[dst]]).view(-1)."""
    e = edge_index.shape[1]
    h = params["lin2_w"].shape[0]           # hidden_channels
    e_pad = max(128, ((e + 127) // 128) * 128)
    bf16 = jnp.bfloat16

    # Edge list padded to a lane-dense width; padded slots = -1 (match no node).
    edges = jnp.full((2, e_pad), -1, jnp.int32).at[:, :e].set(
        edge_index.astype(jnp.int32))

    # All "vector" parameters in one (1, 2h + h + h + h + 1) f32 buffer:
    # [ gcn1_b | gcn2_b | lin1_b | lin2_w^T | lin2_b ]
    vec = jnp.concatenate([
        params["gcn1_b"].reshape(1, -1),
        params["gcn2_b"].reshape(1, -1),
        params["lin1_b"].reshape(1, -1),
        params["lin2_w"].reshape(1, -1),    # (h,1) -> (1,h) == lin2_w.T
        params["lin2_b"].reshape(1, -1),
    ], axis=1).astype(jnp.float32)

    scores = pl.pallas_call(
        fused_forward_kernel,
        out_shape=jax.ShapeDtypeStruct((1, e_pad), jnp.float32),
        in_specs=[pl.BlockSpec(memory_space=pltpu.MemorySpace.VMEM)] * 6,
        out_specs=pl.BlockSpec(memory_space=pltpu.MemorySpace.VMEM),
    )(
        edges,
        x.astype(bf16),
        params["gcn1_w"].astype(bf16),
        params["gcn2_w"].astype(bf16),
        params["lin1_w"].astype(bf16),
        vec,
    )
    return scores[0, :e]                    # .view(-1)


# ----------------------------------------------------------------------------
if __name__ == "__main__":
    key = jax.random.PRNGKey(0)
    k_x, k_e, k_p = jax.random.split(key, 3)

    in_channels = 16
    hidden_channels = 32
    num_nodes = 16
    num_edges = 24

    x = jax.random.normal(k_x, (num_nodes, in_channels), jnp.float32)
    edge_index = jax.random.randint(k_e, (2, num_edges), 0, num_nodes, jnp.int32)

    params = init_params(k_p, in_channels, hidden_channels)

    fwd = jax.jit(mlp_link_predictor_forward)
    scores = fwd(params, x, edge_index)
    jax.block_until_ready(scores)

    assert scores.shape == (num_edges,)
    print("KERNEL_OK")
</pallas_src>

<mosaic_0001>
module attributes {stable_mosaic.version = 11 : i64} {
  func.func @fused_forward_kernel(%arg0: memref<2x128xi32, #tpu.memory_space<vmem>>, %arg1: memref<16x16xbf16, #tpu.memory_space<vmem>>, %arg2: memref<16x64xbf16, #tpu.memory_space<vmem>>, %arg3: memref<64x32xbf16, #tpu.memory_space<vmem>>, %arg4: memref<64x32xbf16, #tpu.memory_space<vmem>>, %arg5: memref<1x161xf32, #tpu.memory_space<vmem>>, %arg6: memref<1x128xf32, #tpu.memory_space<vmem>>) attributes {dimension_semantics = [], scalar_prefetch = 0 : i64, scratch_operands = 0 : i64, tpu.core_type = #tpu.core_type<tc>} {
    %c0 = arith.constant 0 : index
    %c0_0 = arith.constant 0 : index
    %0 = vector.load %arg0[%c0, %c0_0] : memref<2x128xi32, #tpu.memory_space<vmem>>, vector<2x128xi32>
    %1 = tpu.iota {dimensions = array<i32: 0>} : vector<16x128xi32>
    %2 = vector.extract_strided_slice %0 {offsets = [0, 0], sizes = [1, 128], strides = [1, 1]} : vector<2x128xi32> to vector<1x128xi32>
    %3 = vector.broadcast %2 : vector<1x128xi32> to vector<16x128xi32>
    %4 = arith.cmpi eq, %3, %1 : vector<16x128xi32>
    %5 = arith.extui %4 : vector<16x128xi1> to vector<16x128xi32>
    %6 = arith.sitofp %5 : vector<16x128xi32> to vector<16x128xf32>
    %7 = arith.truncf %6 : vector<16x128xf32> to vector<16x128xbf16>
    %8 = vector.extract_strided_slice %0 {offsets = [1, 0], sizes = [1, 128], strides = [1, 1]} : vector<2x128xi32> to vector<1x128xi32>
    %9 = vector.broadcast %8 : vector<1x128xi32> to vector<16x128xi32>
    %10 = arith.cmpi eq, %9, %1 : vector<16x128xi32>
    %11 = arith.extui %10 : vector<16x128xi1> to vector<16x128xi32>
    %12 = arith.sitofp %11 : vector<16x128xi32> to vector<16x128xf32>
    %13 = arith.truncf %12 : vector<16x128xf32> to vector<16x128xbf16>
    %cst = arith.constant dense<0.000000e+00> : vector<16x16xf32>
    %14 = tpu.matmul %13, %7, %cst {dimension_numbers = #tpu.dot_dimension_numbers<[1], [1], [0], [0], [0, 0, 1, 0], [], []>} : vector<16x128xbf16>, vector<16x128xbf16>, vector<16x16xf32> -> vector<16x16xf32>
    %15 = tpu.iota {dimensions = array<i32: 0>} : vector<16x16xi32>
    %16 = tpu.iota {dimensions = array<i32: 1>} : vector<16x16xi32>
    %17 = arith.cmpi eq, %15, %16 : vector<16x16xi32>
    %18 = arith.extui %17 : vector<16x16xi1> to vector<16x16xi32>
    %19 = arith.sitofp %18 : vector<16x16xi32> to vector<16x16xf32>
    %20 = arith.addf %14, %19 : vector<16x16xf32>
    %cst_1 = arith.constant dense<0.000000e+00> : vector<16xf32>
    %21 = vector.multi_reduction <add>, %20, %cst_1 [1] : vector<16x16xf32> to vector<16xf32>
    %22 = vector.shape_cast %21 : vector<16xf32> to vector<16x1xf32>
    %23 = math.rsqrt %22 : vector<16x1xf32>
    %24 = arith.truncf %20 : vector<16x16xf32> to vector<16x16xbf16>
    %c0_2 = arith.constant 0 : index
    %c0_3 = arith.constant 0 : index
    %25 = vector.load %arg1[%c0_2, %c0_3] : memref<16x16xbf16, #tpu.memory_space<vmem>>, vector<16x16xbf16>
    %c0_4 = arith.constant 0 : index
    %c0_5 = arith.constant 0 : index
    %26 = vector.load %arg2[%c0_4, %c0_5] : memref<16x64xbf16, #tpu.memory_space<vmem>>, vector<16x64xbf16>
    %cst_6 = arith.constant dense<0.000000e+00> : vector<16x64xf32>
    %27 = tpu.matmul %25, %26, %cst_6 {dimension_numbers = #tpu.dot_dimension_numbers<[1], [0], [0], [1], [0, 0, 1, 1], [], []>} : vector<16x16xbf16>, vector<16x64xbf16>, vector<16x64xf32> -> vector<16x64xf32>
    %28 = vector.broadcast %23 : vector<16x1xf32> to vector<16x64xf32>
    %29 = arith.mulf %28, %27 : vector<16x64xf32>
    %30 = arith.truncf %29 : vector<16x64xf32> to vector<16x64xbf16>
    %cst_7 = arith.constant dense<0.000000e+00> : vector<16x64xf32>
    %31 = tpu.matmul %24, %30, %cst_7 {dimension_numbers = #tpu.dot_dimension_numbers<[1], [0], [0], [1], [0, 0, 1, 1], [], []>} : vector<16x16xbf16>, vector<16x64xbf16>, vector<16x64xf32> -> vector<16x64xf32>
    %32 = vector.broadcast %23 : vector<16x1xf32> to vector<16x64xf32>
    %33 = arith.mulf %32, %31 : vector<16x64xf32>
    %c0_8 = arith.constant 0 : index
    %c0_9 = arith.constant 0 : index
    %34 = vector.load %arg5[%c0_8, %c0_9] : memref<1x161xf32, #tpu.memory_space<vmem>>, vector<1x64xf32>
    %35 = vector.broadcast %34 : vector<1x64xf32> to vector<16x64xf32>
    %36 = arith.addf %33, %35 : vector<16x64xf32>
    %cst_10 = arith.constant 0.000000e+00 : f32
    %37 = vector.broadcast %cst_10 : f32 to vector<16x64xf32>
    %38 = arith.maximumf %36, %37 : vector<16x64xf32>
    %39 = arith.truncf %38 : vector<16x64xf32> to vector<16x64xbf16>
    %c0_11 = arith.constant 0 : index
    %c0_12 = arith.constant 0 : index
    %40 = vector.load %arg3[%c0_11, %c0_12] : memref<64x32xbf16, #tpu.memory_space<vmem>>, vector<64x32xbf16>
    %cst_13 = arith.constant dense<0.000000e+00> : vector<16x32xf32>
    %41 = tpu.matmul %39, %40, %cst_13 {dimension_numbers = #tpu.dot_dimension_numbers<[1], [0], [0], [1], [0, 0, 1, 1], [], []>} : vector<16x64xbf16>, vector<64x32xbf16>, vector<16x32xf32> -> vector<16x32xf32>
    %42 = vector.broadcast %23 : vector<16x1xf32> to vector<16x32xf32>
    %43 = arith.mulf %42, %41 : vector<16x32xf32>
    %44 = arith.truncf %43 : vector<16x32xf32> to vector<16x32xbf16>
    %cst_14 = arith.constant dense<0.000000e+00> : vector<16x32xf32>
    %45 = tpu.matmul %24, %44, %cst_14 {dimension_numbers = #tpu.dot_dimension_numbers<[1], [0], [0], [1], [0, 0, 1, 1], [], []>} : vector<16x16xbf16>, vector<16x32xbf16>, vector<16x32xf32> -> vector<16x32xf32>
    %46 = vector.broadcast %23 : vector<16x1xf32> to vector<16x32xf32>
    %47 = arith.mulf %46, %45 : vector<16x32xf32>
    %c0_15 = arith.constant 0 : index
    %c64 = arith.constant 64 : index
    %48 = vector.load %arg5[%c0_15, %c64] : memref<1x161xf32, #tpu.memory_space<vmem>>, vector<1x32xf32>
    %49 = vector.broadcast %48 : vector<1x32xf32> to vector<16x32xf32>
    %50 = arith.addf %47, %49 : vector<16x32xf32>
    %51 = arith.truncf %50 : vector<16x32xf32> to vector<16x32xbf16>
    %cst_16 = arith.constant dense<0.000000e+00> : vector<128x32xf32>
    %52 = tpu.matmul %7, %51, %cst_16 {dimension_numbers = #tpu.dot_dimension_numbers<[0], [0], [1], [1], [0, 1, 1, 1], [], []>} : vector<16x128xbf16>, vector<16x32xbf16>, vector<128x32xf32> -> vector<128x32xf32>
    %cst_17 = arith.constant dense<0.000000e+00> : vector<128x32xf32>
    %53 = tpu.matmul %13, %51, %cst_17 {dimension_numbers = #tpu.dot_dimension_numbers<[0], [0], [1], [1], [0, 1, 1, 1], [], []>} : vector<16x128xbf16>, vector<16x32xbf16>, vector<128x32xf32> -> vector<128x32xf32>
    %54 = arith.truncf %52 : vector<128x32xf32> to vector<128x32xbf16>
    %c0_18 = arith.constant 0 : index
    %c0_19 = arith.constant 0 : index
    %55 = vector.load %arg4[%c0_18, %c0_19] : memref<64x32xbf16, #tpu.memory_space<vmem>>, vector<32x32xbf16>
    %cst_20 = arith.constant dense<0.000000e+00> : vector<128x32xf32>
    %56 = tpu.matmul %54, %55, %cst_20 {dimension_numbers = #tpu.dot_dimension_numbers<[1], [0], [0], [1], [0, 0, 1, 1], [], []>} : vector<128x32xbf16>, vector<32x32xbf16>, vector<128x32xf32> -> vector<128x32xf32>
    %57 = arith.truncf %53 : vector<128x32xf32> to vector<128x32xbf16>
    %c32 = arith.constant 32 : index
    %c0_21 = arith.constant 0 : index
    %58 = vector.load %arg4[%c32, %c0_21] : memref<64x32xbf16, #tpu.memory_space<vmem>>, vector<32x32xbf16>
    %cst_22 = arith.constant dense<0.000000e+00> : vector<128x32xf32>
    %59 = tpu.matmul %57, %58, %cst_22 {dimension_numbers = #tpu.dot_dimension_numbers<[1], [0], [0], [1], [0, 0, 1, 1], [], []>} : vector<128x32xbf16>, vector<32x32xbf16>, vector<128x32xf32> -> vector<128x32xf32>
    %60 = arith.addf %56, %59 : vector<128x32xf32>
    %c0_23 = arith.constant 0 : index
    %c96 = arith.constant 96 : index
    %61 = vector.load %arg5[%c0_23, %c96] : memref<1x161xf32, #tpu.memory_space<vmem>>, vector<1x32xf32>
    %62 = vector.broadcast %61 : vector<1x32xf32> to vector<128x32xf32>
    %63 = arith.addf %60, %62 : vector<128x32xf32>
    %cst_24 = arith.constant 0.000000e+00 : f32
    %64 = vector.broadcast %cst_24 : f32 to vector<128x32xf32>
    %65 = arith.maximumf %63, %64 : vector<128x32xf32>
    %c0_25 = arith.constant 0 : index
    %c128 = arith.constant 128 : index
    %66 = vector.load %arg5[%c0_25, %c128] : memref<1x161xf32, #tpu.memory_space<vmem>>, vector<1x32xf32>
    %67 = arith.truncf %66 : vector<1x32xf32> to vector<1x32xbf16>
    %68 = arith.truncf %65 : vector<128x32xf32> to vector<128x32xbf16>
    %cst_26 = arith.constant dense<0.000000e+00> : vector<1x128xf32>
    %69 = tpu.matmul %67, %68, %cst_26 {dimension_numbers = #tpu.dot_dimension_numbers<[1], [1], [0], [0], [0, 0, 1, 0], [], []>} : vector<1x32xbf16>, vector<128x32xbf16>, vector<1x128xf32> -> vector<1x128xf32>
    %c0_27 = arith.constant 0 : index
    %c160 = arith.constant 160 : index
    %70 = vector.load %arg5[%c0_27, %c160] : memref<1x161xf32, #tpu.memory_space<vmem>>, vector<1x1xf32>
    %71 = vector.broadcast %70 : vector<1x1xf32> to vector<1x128xf32>
    %72 = arith.addf %69, %71 : vector<1x128xf32>
    %c0_28 = arith.constant 0 : index
    %c0_29 = arith.constant 0 : index
    %73 = vector.load %arg6[%c0_28, %c0_29] : memref<1x128xf32, #tpu.memory_space<vmem>>, vector<1x128xf32>
    tpu.vector_store %arg6[%c0_28, %c0_29], %72 {strides = array<i32>} : memref<1x128xf32, #tpu.memory_space<vmem>>, vector<1x128xf32>,
    return
  }
}

</mosaic_0001>

<llo_original>
// kernel: mlp_link_predictor_forward.1
$region0: #{mlp_link_predictor_forward.1}
  #allocation0 [shape = 'u32[]', space=smem, size = 0x4, offset = 0x4, fixed_abs, tag = 'smem constant byte address 0x4 - core index']
  #allocation1 [shape = 'u32[144,128]{1,0:T(1,128)}', space=vmem, size = 0x12000, scoped, tag = 'internal scratch']
  %s0 = inlined_call_operand.vmem [shape: s32[2,128], index: 0, kind: input, shape index: {}]
  %s1 = inlined_call_operand.vmem [shape: bf16[16,16], index: 1, kind: input, shape index: {}]
  %s2 = inlined_call_operand.vmem [shape: bf16[16,64], index: 2, kind: input, shape index: {}]
  %s3 = inlined_call_operand.vmem [shape: bf16[64,32], index: 3, kind: input, shape index: {}]
  %s4 = inlined_call_operand.vmem [shape: bf16[64,32], index: 4, kind: input, shape index: {}]
  %s5 = inlined_call_operand.vmem [shape: f32[1,161], index: 5, kind: input, shape index: {}]
  %s6 = inlined_call_operand.vmem [shape: f32[1,128], index: 6, kind: output, shape index: {}]
  %s7 = sld [smem:[#allocation0]]
  $region34: #{mlp_link_predictor_forward.1} parent=0
    _
  %s9 = ssub.s32 1, %s7
  %s10 = scalar_select 0, %s9, %s7
  // Predicated region
  $region2: #{mlp_link_predictor_forward.1} parent=0 // pred_check
    _
  $region3: #{mlp_link_predictor_forward.1} parent=0 // pred_check_branch
    %12 = sbr.rel (0) target = $region5
  $region4: #{mlp_link_predictor_forward.1} parent=0 // pred_region
    _
  $region5: #{mlp_link_predictor_forward.1} parent=0 // pred_fallthru
    _
  // Predicated region
  $region6: #{mlp_link_predictor_forward.1} parent=0 // pred_check
    _
  $region7: #{mlp_link_predictor_forward.1} parent=0 // pred_check_branch
    %14 = sbr.rel (0) target = $region9
  $region8: #{mlp_link_predictor_forward.1} parent=0 // pred_region
    _
  $region9: #{mlp_link_predictor_forward.1} parent=0 // pred_fallthru
    _
  // Predicated region
  $region10: #{mlp_link_predictor_forward.1} parent=0 // pred_check
    _
  $region11: #{mlp_link_predictor_forward.1} parent=0 // pred_check_branch
    %16 = sbr.rel (0) target = $region13
  $region12: #{mlp_link_predictor_forward.1} parent=0 // pred_region
    _
  $region13: #{mlp_link_predictor_forward.1} parent=0 // pred_fallthru
    _
  // Predicated region
  $region14: #{mlp_link_predictor_forward.1} parent=0 // pred_check
    _
  $region15: #{mlp_link_predictor_forward.1} parent=0 // pred_check_branch
    %18 = sbr.rel (0) target = $region17
  $region16: #{mlp_link_predictor_forward.1} parent=0 // pred_region
    _
  $region17: #{mlp_link_predictor_forward.1} parent=0 // pred_fallthru
    _
  // Predicated region
  $region18: #{mlp_link_predictor_forward.1} parent=0 // pred_check
    _
  $region19: #{mlp_link_predictor_forward.1} parent=0 // pred_check_branch
    %20 = sbr.rel (0) target = $region21
  $region20: #{mlp_link_predictor_forward.1} parent=0 // pred_region
    _
  $region21: #{mlp_link_predictor_forward.1} parent=0 // pred_fallthru
    _
  // Predicated region
  $region22: #{mlp_link_predictor_forward.1} parent=0 // pred_check
    _
  $region23: #{mlp_link_predictor_forward.1} parent=0 // pred_check_branch
    %22 = sbr.rel (0) target = $region25
  $region24: #{mlp_link_predictor_forward.1} parent=0 // pred_region
    _
  $region25: #{mlp_link_predictor_forward.1} parent=0 // pred_fallthru
    _
  %v24 = vld [vmem:[%s0] sm:$0x3]
  %v25 = vlaneseq
  %v26 = vshrl.u32 %v25, 7
  %v27 = vadd.s32 %v26, 8
  %v28 = vlaneseq
  %v29 = vshrl.u32 %v28, 7
  %v30 = vsub.s32 0, %v29
  %v31 = vrot.slane %v24, %v30
  %vm32 = vcmp.eq.s32.totalorder %v31, %v26
  %vm33 = vcmp.eq.s32.totalorder %v31, %v27
  %v34 = vsel %vm32, 1, 0
  %v35 = vsel %vm33, 1, 0
  %v36 = vcvt.s32.f32 %v34
  %v37 = vcvt.s32.f32 %v35
  %v38 = vpack.c.bf16 %v37, %v36
  %v39 = vlaneseq
  %v40 = vshrl.u32 %v39, 7
  %v41 = vsub.s32 1, %v40
  %v42 = vrot.slane %v24, %v41
  %vm43 = vcmp.eq.s32.totalorder %v42, %v26
  %vm44 = vcmp.eq.s32.totalorder %v42, %v27
  %v45 = vsel %vm43, 1, 0
  %v46 = vsel %vm44, 1, 0
  %v47 = vcvt.s32.f32 %v45
  %v48 = vcvt.s32.f32 %v46
  %v49 = vpack.c.bf16 %v48, %v47
  %v50 = vlaneseq
  %v51 = vand.u32 %v50, 127
  %vm52 = vcmp.eq.s32.totalorder %v26, %v51
  %vm53 = vcmp.eq.s32.totalorder %v27, %v51
  %v54 = vsel %vm52, 1, 0
  %v55 = vsel %vm53, 1, 0
  %v56 = vcvt.s32.f32 %v54
  %v57 = vcvt.s32.f32 %v55
  %58 = vmatprep.subr.bf16.mxu0 0
  %59 = vmatpush1.bf16.xpose.msra.mxu0 0
  %60 = vmatprep.subr.bf16.mxu0 0
  %61 = vmatpush1.bf16.xpose.msra.mxu0 0
  %62 = vmatprep.subr.bf16.mxu0 0
  %63 = vmatpush1.bf16.xpose.msra.mxu0 0
  %64 = vmatprep.subr.bf16.mxu0 0
  %65 = vmatpush1.bf16.xpose.msra.mxu0 0
  %66 = vmatprep.subr.bf16.mxu0 0
  %67 = vmatpush1.bf16.xpose.msra.mxu0 0
  %68 = vmatprep.subr.bf16.mxu0 0
  %69 = vmatpush1.bf16.xpose.msra.mxu0 0
  %70 = vmatprep.subr.bf16.mxu0 0
  %71 = vmatpush1.bf16.xpose.msra.mxu0 0
  %72 = vmatprep.subr.bf16.mxu0 0
  %73 = vmatpush1.bf16.xpose.msra.mxu0 %v38
  %74 = vmatprep.subr.bf16.mxu0 0
  %75 = vmatpush2.bf16.xpose.msra.mxu0 0
  %76 = vmatprep.subr.bf16.mxu0 0
  %77 = vmatpush2.bf16.xpose.msra.mxu0 0
  %78 = vmatprep.subr.bf16.mxu0 0
  %79 = vmatpush2.bf16.xpose.msra.mxu0 0
  %80 = vmatprep.subr.bf16.mxu0 0
  %81 = vmatpush2.bf16.xpose.msra.mxu0 0
  %82 = vmatprep.subr.bf16.mxu0 0
  %83 = vmatpush2.bf16.xpose.msra.mxu0 0
  %84 = vmatprep.subr.bf16.mxu0 0
  %85 = vmatpush2.bf16.xpose.msra.mxu0 0
  %86 = vmatprep.subr.bf16.mxu0 0
  %87 = vmatpush2.bf16.xpose.msra.mxu0 0
  %88 = vmatprep.subr.bf16.mxu0 0
  %89 = vmatpush2.bf16.xpose.msra.mxu0 0
  %90 = vmatprep.mubr.bf16.mxu0 0
  %91 = vmatmul.mubr.bf16.gmra.mxu0 %v49
  %v92 = vpop.f32.mrf.mxu0
  %v93 = vadd.f32 %v56, %v92
  %v94 = vpop.f32.mrf.mxu0
  %v95 = vpop.f32.mrf.mxu0
  %v96 = vadd.f32 %v57, %v95
  %v97 = vpop.f32.mrf.mxu0
  %98 = vdwg.mxu0
  %vm99 = vcmask 130048
  %v100 = vsel %vm99, %v93, 0.0
  %101 = vadd.xlane.f32.xlu0 %v100
  %v102 = vpop.xlane.xlu0 %101
  %v103 = vsel %vm99, %v96, 0.0
  %104 = vadd.xlane.f32.xlu0 %v103
  %v105 = vpop.xlane.xlu0 %104
  %v106 = vrsqrt.pop %v102
  %v107 = vrsqrt.pop %v105
  %v108 = vpack.c.bf16 %v96, %v93
  %v109 = vld [vmem:[%s1] sm:$0xf]
  %v110 = vld [vmem:[%s1 + $0x4] sm:$0xf]
  %v111 = vld [vmem:[%s2] sm:$0xf]
  %v112 = vld [vmem:[%s2 + $0x4] sm:$0xf]
  %v115 = vunpack.c.l.b16 %v109
  %v116 = vunpack.c.l.b16 %v110
  %v117 = vpack.c.b16 %v116, %v115
  %v120 = vunpack.c.l.b16 %v111
  %v121 = vunpack.c.l.b16 %v112
  %v122 = vpack.c.b16 %v121, %v120
  %v125 = vsel %vm99, %v117, 0
  %127 = vmatprep.subr.bf16.mxu0 0
  %128 = vmatpush1.bf16.msra.mxu0 0
  %129 = vmatprep.subr.bf16.mxu0 0
  %130 = vmatpush1.bf16.msra.mxu0 0
  %131 = vmatprep.subr.bf16.mxu0 0
  %132 = vmatpush1.bf16.msra.mxu0 0
  %133 = vmatprep.subr.bf16.mxu0 0
  %134 = vmatpush1.bf16.msra.mxu0 0
  %135 = vmatprep.subr.bf16.mxu0 0
  %136 = vmatpush1.bf16.msra.mxu0 0
  %137 = vmatprep.subr.bf16.mxu0 0
  %138 = vmatpush1.bf16.msra.mxu0 0
  %139 = vmatprep.subr.bf16.mxu0 0
  %140 = vmatpush1.bf16.msra.mxu0 0
  %141 = vmatprep.subr.bf16.mxu0 0
  %142 = vmatpush1.bf16.msra.mxu0 %v122
  %143 = vmatprep.subr.bf16.mxu0 0
  %144 = vmatpush2.bf16.msra.mxu0 0
  %145 = vmatprep.subr.bf16.mxu0 0
  %146 = vmatpush2.bf16.msra.mxu0 0
  %147 = vmatprep.subr.bf16.mxu0 0
  %148 = vmatpush2.bf16.msra.mxu0 0
  %149 = vmatprep.subr.bf16.mxu0 0
  %150 = vmatpush2.bf16.msra.mxu0 0
  %151 = vmatprep.subr.bf16.mxu0 0
  %152 = vmatpush2.bf16.msra.mxu0 0
  %153 = vmatprep.subr.bf16.mxu0 0
  %154 = vmatpush2.bf16.msra.mxu0 0
  %155 = vmatprep.subr.bf16.mxu0 0
  %156 = vmatpush2.bf16.msra.mxu0 0
  %157 = vmatprep.subr.bf16.mxu0 0
  %158 = vmatpush2.bf16.msra.mxu0 0
  %159 = vmatprep.mubr.bf16.mxu0 0
  %160 = vmatmul.mubr.bf16.gmra.mxu0 %v125
  %v161 = vpop.f32.mrf.mxu0
  %v162 = vadd.f32 0.0, %v161
  %v163 = vpop.f32.mrf.mxu0
  %v164 = vpop.f32.mrf.mxu0
  %v165 = vadd.f32 0.0, %v164
  %v166 = vpop.f32.mrf.mxu0
  %167 = vdwg.mxu0
  %v168 = vmul.f32 %v106, %v162
  %v169 = vmul.f32 %v107, %v165
  %v170 = vpack.c.bf16 %v169, %v168
  %v172 = vsel %vm99, %v108, 0
  %174 = vmatprep.subr.bf16.mxu0 0
  %175 = vmatpush1.bf16.msra.mxu0 0
  %176 = vmatprep.subr.bf16.mxu0 0
  %177 = vmatpush1.bf16.msra.mxu0 0
  %178 = vmatprep.subr.bf16.mxu0 0
  %179 = vmatpush1.bf16.msra.mxu0 0
  %180 = vmatprep.subr.bf16.mxu0 0
  %181 = vmatpush1.bf16.msra.mxu0 0
  %182 = vmatprep.subr.bf16.mxu0 0
  %183 = vmatpush1.bf16.msra.mxu0 0
  %184 = vmatprep.subr.bf16.mxu0 0
  %185 = vmatpush1.bf16.msra.mxu0 0
  %186 = vmatprep.subr.bf16.mxu0 0
  %187 = vmatpush1.bf16.msra.mxu0 0
  %188 = vmatprep.subr.bf16.mxu0 0
  %189 = vmatpush1.bf16.msra.mxu0 %v170
  %190 = vmatprep.subr.bf16.mxu0 0
  %191 = vmatpush2.bf16.msra.mxu0 0
  %192 = vmatprep.subr.bf16.mxu0 0
  %193 = vmatpush2.bf16.msra.mxu0 0
  %194 = vmatprep.subr.bf16.mxu0 0
  %195 = vmatpush2.bf16.msra.mxu0 0
  %196 = vmatprep.subr.bf16.mxu0 0
  %197 = vmatpush2.bf16.msra.mxu0 0
  %198 = vmatprep.subr.bf16.mxu0 0
  %199 = vmatpush2.bf16.msra.mxu0 0
  %200 = vmatprep.subr.bf16.mxu0 0
  %201 = vmatpush2.bf16.msra.mxu0 0
  %202 = vmatprep.subr.bf16.mxu0 0
  %203 = vmatpush2.bf16.msra.mxu0 0
  %204 = vmatprep.subr.bf16.mxu0 0
  %205 = vmatpush2.bf16.msra.mxu0 0
  %206 = vmatprep.mubr.bf16.mxu0 0
  %207 = vmatmul.mubr.bf16.gmra.mxu0 %v172
  %v208 = vpop.f32.mrf.mxu0
  %v209 = vadd.f32 0.0, %v208
  %v210 = vpop.f32.mrf.mxu0
  %v211 = vpop.f32.mrf.mxu0
  %v212 = vadd.f32 0.0, %v211
  %v213 = vpop.f32.mrf.mxu0
  %214 = vdwg.mxu0
  %v215 = vmul.f32 %v106, %v209
  %v216 = vmul.f32 %v107, %v212
  %v217 = vld [vmem:[%s5] sm:$0x1]
  %v219 = vlaneseq
  %v220 = vshrl.u32 %v219, 7
  %v221 = vsub.s32 0, %v220
  %v222 = vrot.slane %v217, %v221
  %v224 = vadd.f32 %v215, %v222
  %v225 = vadd.f32 %v216, %v222
  %v226 = vmax.f32 %v224, 0.0
  %v227 = vmax.f32 %v225, 0.0
  %v228 = vpack.c.bf16 %v227, %v226
  %v229 = vld [vmem:[%s3] sm:$0xf]
  %v230 = vld [vmem:[%s3 + $0x4] sm:$0xf]
  %v231 = vld [vmem:[%s3 + $0x8] sm:$0xf]
  %v232 = vld [vmem:[%s3 + $0xc] sm:$0xf]
  %v233 = vld [vmem:[%s3 + $0x10] sm:$0xf]
  %v234 = vld [vmem:[%s3 + $0x14] sm:$0xf]
  %v235 = vld [vmem:[%s3 + $0x18] sm:$0xf]
  %v236 = vld [vmem:[%s3 + $0x1c] sm:$0xf]
  %v245 = vunpack.c.l.b16 %v229
  %v246 = vunpack.c.l.b16 %v230
  %v247 = vunpack.c.l.b16 %v231
  %v248 = vunpack.c.l.b16 %v232
  %v249 = vunpack.c.l.b16 %v233
  %v250 = vunpack.c.l.b16 %v234
  %v251 = vunpack.c.l.b16 %v235
  %v252 = vunpack.c.l.b16 %v236
  %v253 = vpack.c.b16 %v246, %v245
  %v254 = vpack.c.b16 %v248, %v247
  %v255 = vpack.c.b16 %v250, %v249
  %v256 = vpack.c.b16 %v252, %v251
  %vm261 = vcmask 523264
  %v263 = vsel %vm261, %v228, 0
  %265 = vmatprep.subr.bf16.mxu0 0
  %266 = vmatpush1.bf16.msra.mxu0 0
  %267 = vmatprep.subr.bf16.mxu0 0
  %268 = vmatpush1.bf16.msra.mxu0 0
  %269 = vmatprep.subr.bf16.mxu0 0
  %270 = vmatpush1.bf16.msra.mxu0 0
  %271 = vmatprep.subr.bf16.mxu0 0
  %272 = vmatpush1.bf16.msra.mxu0 0
  %273 = vmatprep.subr.bf16.mxu0 0
  %274 = vmatpush1.bf16.msra.mxu0 %v256
  %275 = vmatprep.subr.bf16.mxu0 0
  %276 = vmatpush1.bf16.msra.mxu0 %v255
  %277 = vmatprep.subr.bf16.mxu0 0
  %278 = vmatpush1.bf16.msra.mxu0 %v254
  %279 = vmatprep.subr.bf16.mxu0 0
  %280 = vmatpush1.bf16.msra.mxu0 %v253
  %281 = vmatprep.subr.bf16.mxu0 0
  %282 = vmatpush2.bf16.msra.mxu0 0
  %283 = vmatprep.subr.bf16.mxu0 0
  %284 = vmatpush2.bf16.msra.mxu0 0
  %285 = vmatprep.subr.bf16.mxu0 0
  %286 = vmatpush2.bf16.msra.mxu0 0
  %287 = vmatprep.subr.bf16.mxu0 0
  %288 = vmatpush2.bf16.msra.mxu0 0
  %289 = vmatprep.subr.bf16.mxu0 0
  %290 = vmatpush2.bf16.msra.mxu0 0
  %291 = vmatprep.subr.bf16.mxu0 0
  %292 = vmatpush2.bf16.msra.mxu0 0
  %293 = vmatprep.subr.bf16.mxu0 0
  %294 = vmatpush2.bf16.msra.mxu0 0
  %295 = vmatprep.subr.bf16.mxu0 0
  %296 = vmatpush2.bf16.msra.mxu0 0
  %297 = vmatprep.mubr.bf16.mxu0 0
  %298 = vmatmul.mubr.bf16.gmra.mxu0 %v263
  %v299 = vpop.f32.mrf.mxu0
  %v300 = vadd.f32 0.0, %v299
  %v301 = vpop.f32.mrf.mxu0
  %v302 = vpop.f32.mrf.mxu0
  %v303 = vadd.f32 0.0, %v302
  %v304 = vpop.f32.mrf.mxu0
  %305 = vdwg.mxu0
  %v306 = vmul.f32 %v106, %v300
  %v307 = vmul.f32 %v107, %v303
  %v308 = vpack.c.bf16 %v307, %v306
  %309 = vmatprep.subr.bf16.mxu0 0
  %310 = vmatpush1.bf16.msra.mxu0 0
  %311 = vmatprep.subr.bf16.mxu0 0
  %312 = vmatpush1.bf16.msra.mxu0 0
  %313 = vmatprep.subr.bf16.mxu0 0
  %314 = vmatpush1.bf16.msra.mxu0 0
  %315 = vmatprep.subr.bf16.mxu0 0
  %316 = vmatpush1.bf16.msra.mxu0 0
  %317 = vmatprep.subr.bf16.mxu0 0
  %318 = vmatpush1.bf16.msra.mxu0 0
  %319 = vmatprep.subr.bf16.mxu0 0
  %320 = vmatpush1.bf16.msra.mxu0 0
  %321 = vmatprep.subr.bf16.mxu0 0
  %322 = vmatpush1.bf16.msra.mxu0 0
  %323 = vmatprep.subr.bf16.mxu0 0
  %324 = vmatpush1.bf16.msra.mxu0 %v308
  %325 = vmatprep.subr.bf16.mxu0 0
  %326 = vmatpush2.bf16.msra.mxu0 0
  %327 = vmatprep.subr.bf16.mxu0 0
  %328 = vmatpush2.bf16.msra.mxu0 0
  %329 = vmatprep.subr.bf16.mxu0 0
  %330 = vmatpush2.bf16.msra.mxu0 0
  %331 = vmatprep.subr.bf16.mxu0 0
  %332 = vmatpush2.bf16.msra.mxu0 0
  %333 = vmatprep.subr.bf16.mxu0 0
  %334 = vmatpush2.bf16.msra.mxu0 0
  %335 = vmatprep.subr.bf16.mxu0 0
  %336 = vmatpush2.bf16.msra.mxu0 0
  %337 = vmatprep.subr.bf16.mxu0 0
  %338 = vmatpush2.bf16.msra.mxu0 0
  %339 = vmatprep.subr.bf16.mxu0 0
  %340 = vmatpush2.bf16.msra.mxu0 0
  %341 = vmatprep.mubr.bf16.mxu0 0
  %342 = vmatmul.mubr.bf16.gmra.mxu0 %v172
  %v343 = vpop.f32.mrf.mxu0
  %v344 = vadd.f32 0.0, %v343
  %v345 = vpop.f32.mrf.mxu0
  %v346 = vpop.f32.mrf.mxu0
  %v347 = vadd.f32 0.0, %v346
  %v348 = vpop.f32.mrf.mxu0
  %349 = vdwg.mxu0
  %v350 = vmul.f32 %v106, %v344
  %v351 = vmul.f32 %v107, %v347
  %352 = vrot.lane.b32.xlu0 %v222, 64
  %v353 = vpop.permute.xlu0 %352
  %v355 = vadd.f32 %v350, %v353
  %v356 = vadd.f32 %v351, %v353
  %v357 = vpack.c.bf16 %v356, %v355
  %358 = vxpose.xlu0.c.b16.start [1/8] %v38, 128
  %359 = vxpose.xlu0.c.b16.cont [2/8] 0, 128
  %360 = vxpose.xlu0.c.b16.cont [3/8] 0, 128
  %361 = vxpose.xlu0.c.b16.cont [4/8] 0, 128
  %362 = vxpose.xlu0.c.b16.cont [5/8] 0, 128
  %363 = vxpose.xlu0.c.b16.cont [6/8] 0, 128
  %364 = vxpose.xlu0.c.b16.cont [7/8] 0, 128
  %365 = vxpose.xlu0.c.b16.end [8/8] 0, 128
  %v366 = vpop.trf.xlu0
  %v367 = vpop.trf.xlu0
  %v368 = vpop.trf.xlu0
  %v369 = vpop.trf.xlu0
  %v370 = vpop.trf.xlu0
  %v371 = vpop.trf.xlu0
  %v372 = vpop.trf.xlu0
  %v373 = vpop.trf.xlu0
  %v375 = vsel %vm99, %v366, 0
  %v378 = vsel %vm99, %v367, 0
  %v381 = vsel %vm99, %v368, 0
  %v384 = vsel %vm99, %v369, 0
  %v387 = vsel %vm99, %v370, 0
  %v390 = vsel %vm99, %v371, 0
  %v393 = vsel %vm99, %v372, 0
  %v396 = vsel %vm99, %v373, 0
  %398 = vmatprep.subr.bf16.mxu0 0
  %399 = vmatpush1.bf16.msra.mxu0 0
  %400 = vmatprep.subr.bf16.mxu0 0
  %401 = vmatpush1.bf16.msra.mxu0 0
  %402 = vmatprep.subr.bf16.mxu0 0
  %403 = vmatpush1.bf16.msra.mxu0 0
  %404 = vmatprep.subr.bf16.mxu0 0
  %405 = vmatpush1.bf16.msra.mxu0 0
  %406 = vmatprep.subr.bf16.mxu0 0
  %407 = vmatpush1.bf16.msra.mxu0 0
  %408 = vmatprep.subr.bf16.mxu0 0
  %409 = vmatpush1.bf16.msra.mxu0 0
  %410 = vmatprep.subr.bf16.mxu0 0
  %411 = vmatpush1.bf16.msra.mxu0 0
  %412 = vmatprep.subr.bf16.mxu0 0
  %413 = vmatpush1.bf16.msra.mxu0 %v357
  %414 = vmatprep.subr.bf16.mxu0 0
  %415 = vmatpush2.bf16.msra.mxu0 0
  %416 = vmatprep.subr.bf16.mxu0 0
  %417 = vmatpush2.bf16.msra.mxu0 0
  %418 = vmatprep.subr.bf16.mxu0 0
  %419 = vmatpush2.bf16.msra.mxu0 0
  %420 = vmatprep.subr.bf16.mxu0 0
  %421 = vmatpush2.bf16.msra.mxu0 0
  %422 = vmatprep.subr.bf16.mxu0 0
  %423 = vmatpush2.bf16.msra.mxu0 0
  %424 = vmatprep.subr.bf16.mxu0 0
  %425 = vmatpush2.bf16.msra.mxu0 0
  %426 = vmatprep.subr.bf16.mxu0 0
  %427 = vmatpush2.bf16.msra.mxu0 0
  %428 = vmatprep.subr.bf16.mxu0 0
  %429 = vmatpush2.bf16.msra.mxu0 0
  %430 = vmatprep.mubr.bf16.mxu0 0
  %431 = vmatmul.mubr.bf16.gmra.mxu0 %v375
  %v432 = vpop.f32.mrf.mxu0
  %v433 = vadd.f32 0.0, %v432
  %v434 = vpop.f32.mrf.mxu0
  %v435 = vpop.f32.mrf.mxu0
  %v436 = vadd.f32 0.0, %v435
  %v437 = vpop.f32.mrf.mxu0
  %438 = vmatprep.mubr.bf16.mxu0 0
  %439 = vmatmul.mubr.bf16.gmra.mxu0 %v378
  %v440 = vpop.f32.mrf.mxu0
  %v441 = vadd.f32 0.0, %v440
  %v442 = vpop.f32.mrf.mxu0
  %v443 = vpop.f32.mrf.mxu0
  %v444 = vadd.f32 0.0, %v443
  %v445 = vpop.f32.mrf.mxu0
  %446 = vmatprep.mubr.bf16.mxu0 0
  %447 = vmatmul.mubr.bf16.gmra.mxu0 %v381
  %v448 = vpop.f32.mrf.mxu0
  %v449 = vadd.f32 0.0, %v448
  %v450 = vpop.f32.mrf.mxu0
  %v451 = vpop.f32.mrf.mxu0
  %v452 = vadd.f32 0.0, %v451
  %v453 = vpop.f32.mrf.mxu0
  %454 = vmatprep.mubr.bf16.mxu0 0
  %455 = vmatmul.mubr.bf16.gmra.mxu0 %v384
  %v456 = vpop.f32.mrf.mxu0
  %v457 = vadd.f32 0.0, %v456
  %v458 = vpop.f32.mrf.mxu0
  %v459 = vpop.f32.mrf.mxu0
  %v460 = vadd.f32 0.0, %v459
  %v461 = vpop.f32.mrf.mxu0
  %462 = vmatprep.mubr.bf16.mxu0 0
  %463 = vmatmul.mubr.bf16.gmra.mxu0 %v387
  %v464 = vpop.f32.mrf.mxu0
  %v465 = vadd.f32 0.0, %v464
  %v466 = vpop.f32.mrf.mxu0
  %v467 = vpop.f32.mrf.mxu0
  %v468 = vadd.f32 0.0, %v467
  %v469 = vpop.f32.mrf.mxu0
  %470 = vmatprep.mubr.bf16.mxu0 0
  %471 = vmatmul.mubr.bf16.gmra.mxu0 %v390
  %v472 = vpop.f32.mrf.mxu0
  %v473 = vadd.f32 0.0, %v472
  %v474 = vpop.f32.mrf.mxu0
  %v475 = vpop.f32.mrf.mxu0
  %v476 = vadd.f32 0.0, %v475
  %v477 = vpop.f32.mrf.mxu0
  %478 = vmatprep.mubr.bf16.mxu0 0
  %479 = vmatmul.mubr.bf16.gmra.mxu0 %v393
  %v480 = vpop.f32.mrf.mxu0
  %v481 = vadd.f32 0.0, %v480
  %v482 = vpop.f32.mrf.mxu0
  %v483 = vpop.f32.mrf.mxu0
  %v484 = vadd.f32 0.0, %v483
  %v485 = vpop.f32.mrf.mxu0
  %486 = vmatprep.mubr.bf16.mxu0 0
  %487 = vmatmul.mubr.bf16.gmra.mxu0 %v396
  %v488 = vpop.f32.mrf.mxu0
  %v489 = vadd.f32 0.0, %v488
  %v490 = vpop.f32.mrf.mxu0
  %v491 = vpop.f32.mrf.mxu0
  %v492 = vadd.f32 0.0, %v491
  %v493 = vpop.f32.mrf.mxu0
  %494 = vdwg.mxu0
  %495 = vxpose.xlu0.c.b16.start [1/8] %v49, 128
  %496 = vxpose.xlu0.c.b16.cont [2/8] 0, 128
  %497 = vxpose.xlu0.c.b16.cont [3/8] 0, 128
  %498 = vxpose.xlu0.c.b16.cont [4/8] 0, 128
  %499 = vxpose.xlu0.c.b16.cont [5/8] 0, 128
  %500 = vxpose.xlu0.c.b16.cont [6/8] 0, 128
  %501 = vxpose.xlu0.c.b16.cont [7/8] 0, 128
  %502 = vxpose.xlu0.c.b16.end [8/8] 0, 128
  %v503 = vpop.trf.xlu0
  %v504 = vpop.trf.xlu0
  %v505 = vpop.trf.xlu0
  %v506 = vpop.trf.xlu0
  %v507 = vpop.trf.xlu0
  %v508 = vpop.trf.xlu0
  %v509 = vpop.trf.xlu0
  %v510 = vpop.trf.xlu0
  %v512 = vsel %vm99, %v503, 0
  %v515 = vsel %vm99, %v504, 0
  %v518 = vsel %vm99, %v505, 0
  %v521 = vsel %vm99, %v506, 0
  %v524 = vsel %vm99, %v507, 0
  %v527 = vsel %vm99, %v508, 0
  %v530 = vsel %vm99, %v509, 0
  %v533 = vsel %vm99, %v510, 0
  %535 = vmatprep.subr.bf16.mxu0 0
  %536 = vmatpush1.bf16.msra.mxu0 0
  %537 = vmatprep.subr.bf16.mxu0 0
  %538 = vmatpush1.bf16.msra.mxu0 0
  %539 = vmatprep.subr.bf16.mxu0 0
  %540 = vmatpush1.bf16.msra.mxu0 0
  %541 = vmatprep.subr.bf16.mxu0 0
  %542 = vmatpush1.bf16.msra.mxu0 0
  %543 = vmatprep.subr.bf16.mxu0 0
  %544 = vmatpush1.bf16.msra.mxu0 0
  %545 = vmatprep.subr.bf16.mxu0 0
  %546 = vmatpush1.bf16.msra.mxu0 0
  %547 = vmatprep.subr.bf16.mxu0 0
  %548 = vmatpush1.bf16.msra.mxu0 0
  %549 = vmatprep.subr.bf16.mxu0 0
  %550 = vmatpush1.bf16.msra.mxu0 %v357
  %551 = vmatprep.subr.bf16.mxu0 0
  %552 = vmatpush2.bf16.msra.mxu0 0
  %553 = vmatprep.subr.bf16.mxu0 0
  %554 = vmatpush2.bf16.msra.mxu0 0
  %555 = vmatprep.subr.bf16.mxu0 0
  %556 = vmatpush2.bf16.msra.mxu0 0
  %557 = vmatprep.subr.bf16.mxu0 0
  %558 = vmatpush2.bf16.msra.mxu0 0
  %559 = vmatprep.subr.bf16.mxu0 0
  %560 = vmatpush2.bf16.msra.mxu0 0
  %561 = vmatprep.subr.bf16.mxu0 0
  %562 = vmatpush2.bf16.msra.mxu0 0
  %563 = vmatprep.subr.bf16.mxu0 0
  %564 = vmatpush2.bf16.msra.mxu0 0
  %565 = vmatprep.subr.bf16.mxu0 0
  %566 = vmatpush2.bf16.msra.mxu0 0
  %567 = vmatprep.mubr.bf16.mxu0 0
  %568 = vmatmul.mubr.bf16.gmra.mxu0 %v512
  %v569 = vpop.f32.mrf.mxu0
  %v570 = vadd.f32 0.0, %v569
  %v571 = vpop.f32.mrf.mxu0
  %v572 = vpop.f32.mrf.mxu0
  %v573 = vadd.f32 0.0, %v572
  %v574 = vpop.f32.mrf.mxu0
  %575 = vmatprep.mubr.bf16.mxu0 0
  %576 = vmatmul.mubr.bf16.gmra.mxu0 %v515
  %v577 = vpop.f32.mrf.mxu0
  %v578 = vadd.f32 0.0, %v577
  %v579 = vpop.f32.mrf.mxu0
  %v580 = vpop.f32.mrf.mxu0
  %v581 = vadd.f32 0.0, %v580
  %v582 = vpop.f32.mrf.mxu0
  %583 = vmatprep.mubr.bf16.mxu0 0
  %584 = vmatmul.mubr.bf16.gmra.mxu0 %v518
  %v585 = vpop.f32.mrf.mxu0
  %v586 = vadd.f32 0.0, %v585
  %v587 = vpop.f32.mrf.mxu0
  %v588 = vpop.f32.mrf.mxu0
  %v589 = vadd.f32 0.0, %v588
  %v590 = vpop.f32.mrf.mxu0
  %591 = vmatprep.mubr.bf16.mxu0 0
  %592 = vmatmul.mubr.bf16.gmra.mxu0 %v521
  %v593 = vpop.f32.mrf.mxu0
  %v594 = vadd.f32 0.0, %v593
  %v595 = vpop.f32.mrf.mxu0
  %v596 = vpop.f32.mrf.mxu0
  %v597 = vadd.f32 0.0, %v596
  %v598 = vpop.f32.mrf.mxu0
  %599 = vmatprep.mubr.bf16.mxu0 0
  %600 = vmatmul.mubr.bf16.gmra.mxu0 %v524
  %v601 = vpop.f32.mrf.mxu0
  %v602 = vadd.f32 0.0, %v601
  %v603 = vpop.f32.mrf.mxu0
  %v604 = vpop.f32.mrf.mxu0
  %v605 = vadd.f32 0.0, %v604
  %v606 = vpop.f32.mrf.mxu0
  %607 = vmatprep.mubr.bf16.mxu0 0
  %608 = vmatmul.mubr.bf16.gmra.mxu0 %v527
  %v609 = vpop.f32.mrf.mxu0
  %v610 = vadd.f32 0.0, %v609
  %v611 = vpop.f32.mrf.mxu0
  %v612 = vpop.f32.mrf.mxu0
  %v613 = vadd.f32 0.0, %v612
  %v614 = vpop.f32.mrf.mxu0
  %615 = vmatprep.mubr.bf16.mxu0 0
  %616 = vmatmul.mubr.bf16.gmra.mxu0 %v530
  %v617 = vpop.f32.mrf.mxu0
  %v618 = vadd.f32 0.0, %v617
  %v619 = vpop.f32.mrf.mxu0
  %v620 = vpop.f32.mrf.mxu0
  %v621 = vadd.f32 0.0, %v620
  %v622 = vpop.f32.mrf.mxu0
  %623 = vmatprep.mubr.bf16.mxu0 0
  %624 = vmatmul.mubr.bf16.gmra.mxu0 %v533
  %v625 = vpop.f32.mrf.mxu0
  %v626 = vadd.f32 0.0, %v625
  %v627 = vpop.f32.mrf.mxu0
  %v628 = vpop.f32.mrf.mxu0
  %v629 = vadd.f32 0.0, %v628
  %v630 = vpop.f32.mrf.mxu0
  %631 = vdwg.mxu0
  %v632 = vpack.c.bf16 %v436, %v433
  %v633 = vpack.c.bf16 %v444, %v441
  %v634 = vpack.c.bf16 %v452, %v449
  %v635 = vpack.c.bf16 %v460, %v457
  %v636 = vpack.c.bf16 %v468, %v465
  %v637 = vpack.c.bf16 %v476, %v473
  %v638 = vpack.c.bf16 %v484, %v481
  %v639 = vpack.c.bf16 %v492, %v489
  %v640 = vld [vmem:[%s4] sm:$0xf]
  %v641 = vld [vmem:[%s4 + $0x4] sm:$0xf]
  %v642 = vld [vmem:[%s4 + $0x8] sm:$0xf]
  %v643 = vld [vmem:[%s4 + $0xc] sm:$0xf]
  %v644 = vpack.c.bf16 %v573, %v570
  %v645 = vpack.c.bf16 %v581, %v578
  %v646 = vpack.c.bf16 %v589, %v586
  %v647 = vpack.c.bf16 %v597, %v594
  %v648 = vpack.c.bf16 %v605, %v602
  %v649 = vpack.c.bf16 %v613, %v610
  %v650 = vpack.c.bf16 %v621, %v618
  %v651 = vpack.c.bf16 %v629, %v626
  %v652 = vld [vmem:[%s4 + $0x10] sm:$0xf]
  %v653 = vld [vmem:[%s4 + $0x14] sm:$0xf]
  %v654 = vld [vmem:[%s4 + $0x18] sm:$0xf]
  %v655 = vld [vmem:[%s4 + $0x1c] sm:$0xf]
  %v660 = vunpack.c.l.b16 %v652
  %v661 = vunpack.c.l.b16 %v653
  %v662 = vunpack.c.l.b16 %v654
  %v663 = vunpack.c.l.b16 %v655
  %v664 = vpack.c.b16 %v661, %v660
  %v665 = vpack.c.b16 %v663, %v662
  %vm668 = vcmask 261120
  %v670 = vsel %vm668, %v644, 0
  %v673 = vsel %vm668, %v645, 0
  %v676 = vsel %vm668, %v646, 0
  %v679 = vsel %vm668, %v647, 0
  %v682 = vsel %vm668, %v648, 0
  %v685 = vsel %vm668, %v649, 0
  %v688 = vsel %vm668, %v650, 0
  %v691 = vsel %vm668, %v651, 0
  %693 = vmatprep.subr.bf16.mxu0 0
  %694 = vmatpush1.bf16.msra.mxu0 0
  %695 = vmatprep.subr.bf16.mxu0 0
  %696 = vmatpush1.bf16.msra.mxu0 0
  %697 = vmatprep.subr.bf16.mxu0 0
  %698 = vmatpush1.bf16.msra.mxu0 0
  %699 = vmatprep.subr.bf16.mxu0 0
  %700 = vmatpush1.bf16.msra.mxu0 0
  %701 = vmatprep.subr.bf16.mxu0 0
  %702 = vmatpush1.bf16.msra.mxu0 0
  %703 = vmatprep.subr.bf16.mxu0 0
  %704 = vmatpush1.bf16.msra.mxu0 0
  %705 = vmatprep.subr.bf16.mxu0 0
  %706 = vmatpush1.bf16.msra.mxu0 %v665
  %707 = vmatprep.subr.bf16.mxu0 0
  %708 = vmatpush1.bf16.msra.mxu0 %v664
  %709 = vmatprep.subr.bf16.mxu0 0
  %710 = vmatpush2.bf16.msra.mxu0 0
  %711 = vmatprep.subr.bf16.mxu0 0
  %712 = vmatpush2.bf16.msra.mxu0 0
  %713 = vmatprep.subr.bf16.mxu0 0
  %714 = vmatpush2.bf16.msra.mxu0 0
  %715 = vmatprep.subr.bf16.mxu0 0
  %716 = vmatpush2.bf16.msra.mxu0 0
  %717 = vmatprep.subr.bf16.mxu0 0
  %718 = vmatpush2.bf16.msra.mxu0 0
  %719 = vmatprep.subr.bf16.mxu0 0
  %720 = vmatpush2.bf16.msra.mxu0 0
  %721 = vmatprep.subr.bf16.mxu0 0
  %722 = vmatpush2.bf16.msra.mxu0 0
  %723 = vmatprep.subr.bf16.mxu0 0
  %724 = vmatpush2.bf16.msra.mxu0 0
  %725 = vmatprep.mubr.bf16.mxu0 0
  %726 = vmatmul.mubr.bf16.gmra.mxu0 %v670
  %v727 = vpop.f32.mrf.mxu0
  %v728 = vadd.f32 0.0, %v727
  %v729 = vpop.f32.mrf.mxu0
  %v730 = vpop.f32.mrf.mxu0
  %v731 = vadd.f32 0.0, %v730
  %v732 = vpop.f32.mrf.mxu0
  %733 = vmatprep.mubr.bf16.mxu0 0
  %734 = vmatmul.mubr.bf16.gmra.mxu0 %v673
  %v735 = vpop.f32.mrf.mxu0
  %v736 = vadd.f32 0.0, %v735
  %v737 = vpop.f32.mrf.mxu0
  %v738 = vpop.f32.mrf.mxu0
  %v739 = vadd.f32 0.0, %v738
  %v740 = vpop.f32.mrf.mxu0
  %741 = vmatprep.mubr.bf16.mxu0 0
  %742 = vmatmul.mubr.bf16.gmra.mxu0 %v676
  %v743 = vpop.f32.mrf.mxu0
  %v744 = vadd.f32 0.0, %v743
  %v745 = vpop.f32.mrf.mxu0
  %v746 = vpop.f32.mrf.mxu0
  %v747 = vadd.f32 0.0, %v746
  %v748 = vpop.f32.mrf.mxu0
  %749 = vmatprep.mubr.bf16.mxu0 0
  %750 = vmatmul.mubr.bf16.gmra.mxu0 %v679
  %v751 = vpop.f32.mrf.mxu0
  %v752 = vadd.f32 0.0, %v751
  %v753 = vpop.f32.mrf.mxu0
  %v754 = vpop.f32.mrf.mxu0
  %v755 = vadd.f32 0.0, %v754
  %v756 = vpop.f32.mrf.mxu0
  %757 = vmatprep.mubr.bf16.mxu0 0
  %758 = vmatmul.mubr.bf16.gmra.mxu0 %v682
  %v759 = vpop.f32.mrf.mxu0
  %v760 = vadd.f32 0.0, %v759
  %v761 = vpop.f32.mrf.mxu0
  %v762 = vpop.f32.mrf.mxu0
  %v763 = vadd.f32 0.0, %v762
  %v764 = vpop.f32.mrf.mxu0
  %765 = vmatprep.mubr.bf16.mxu0 0
  %766 = vmatmul.mubr.bf16.gmra.mxu0 %v685
  %v767 = vpop.f32.mrf.mxu0
  %v768 = vadd.f32 0.0, %v767
  %v769 = vpop.f32.mrf.mxu0
  %v770 = vpop.f32.mrf.mxu0
  %v771 = vadd.f32 0.0, %v770
  %v772 = vpop.f32.mrf.mxu0
  %773 = vmatprep.mubr.bf16.mxu0 0
  %774 = vmatmul.mubr.bf16.gmra.mxu0 %v688
  %v775 = vpop.f32.mrf.mxu0
  %v776 = vadd.f32 0.0, %v775
  %v777 = vpop.f32.mrf.mxu0
  %v778 = vpop.f32.mrf.mxu0
  %v779 = vadd.f32 0.0, %v778
  %v780 = vpop.f32.mrf.mxu0
  %781 = vmatprep.mubr.bf16.mxu0 0
  %782 = vmatmul.mubr.bf16.gmra.mxu0 %v691
  %v783 = vpop.f32.mrf.mxu0
  %v784 = vadd.f32 0.0, %v783
  %v785 = vpop.f32.mrf.mxu0
  %v786 = vpop.f32.mrf.mxu0
  %v787 = vadd.f32 0.0, %v786
  %v788 = vpop.f32.mrf.mxu0
  %789 = vdwg.mxu0
  %v794 = vunpack.c.l.b16 %v640
  %v795 = vunpack.c.l.b16 %v641
  %v796 = vunpack.c.l.b16 %v642
  %v797 = vunpack.c.l.b16 %v643
  %v798 = vpack.c.b16 %v795, %v794
  %v799 = vpack.c.b16 %v797, %v796
  %v803 = vsel %vm668, %v632, 0
  %v806 = vsel %vm668, %v633, 0
  %v809 = vsel %vm668, %v634, 0
  %v812 = vsel %vm668, %v635, 0
  %v815 = vsel %vm668, %v636, 0
  %v818 = vsel %vm668, %v637, 0
  %v821 = vsel %vm668, %v638, 0
  %v824 = vsel %vm668, %v639, 0
  %826 = vmatprep.subr.bf16.mxu0 0
  %827 = vmatpush1.bf16.msra.mxu0 0
  %828 = vmatprep.subr.bf16.mxu0 0
  %829 = vmatpush1.bf16.msra.mxu0 0
  %830 = vmatprep.subr.bf16.mxu0 0
  %831 = vmatpush1.bf16.msra.mxu0 0
  %832 = vmatprep.subr.bf16.mxu0 0
  %833 = vmatpush1.bf16.msra.mxu0 0
  %834 = vmatprep.subr.bf16.mxu0 0
  %835 = vmatpush1.bf16.msra.mxu0 0
  %836 = vmatprep.subr.bf16.mxu0 0
  %837 = vmatpush1.bf16.msra.mxu0 0
  %838 = vmatprep.subr.bf16.mxu0 0
  %839 = vmatpush1.bf16.msra.mxu0 %v799
  %840 = vmatprep.subr.bf16.mxu0 0
  %841 = vmatpush1.bf16.msra.mxu0 %v798
  %842 = vmatprep.subr.bf16.mxu0 0
  %843 = vmatpush2.bf16.msra.mxu0 0
  %844 = vmatprep.subr.bf16.mxu0 0
  %845 = vmatpush2.bf16.msra.mxu0 0
  %846 = vmatprep.subr.bf16.mxu0 0
  %847 = vmatpush2.bf16.msra.mxu0 0
  %848 = vmatprep.subr.bf16.mxu0 0
  %849 = vmatpush2.bf16.msra.mxu0 0
  %850 = vmatprep.subr.bf16.mxu0 0
  %851 = vmatpush2.bf16.msra.mxu0 0
  %852 = vmatprep.subr.bf16.mxu0 0
  %853 = vmatpush2.bf16.msra.mxu0 0
  %854 = vmatprep.subr.bf16.mxu0 0
  %855 = vmatpush2.bf16.msra.mxu0 0
  %856 = vmatprep.subr.bf16.mxu0 0
  %857 = vmatpush2.bf16.msra.mxu0 0
  %858 = vmatprep.mubr.bf16.mxu0 0
  %859 = vmatmul.mubr.bf16.gmra.mxu0 %v803
  %v860 = vpop.f32.mrf.mxu0
  %v861 = vadd.f32 %v728, %v860
  %v862 = vpop.f32.mrf.mxu0
  %v863 = vpop.f32.mrf.mxu0
  %v864 = vadd.f32 %v731, %v863
  %v865 = vpop.f32.mrf.mxu0
  %866 = vmatprep.mubr.bf16.mxu0 0
  %867 = vmatmul.mubr.bf16.gmra.mxu0 %v806
  %v868 = vpop.f32.mrf.mxu0
  %v869 = vadd.f32 %v736, %v868
  %v870 = vpop.f32.mrf.mxu0
  %v871 = vpop.f32.mrf.mxu0
  %v872 = vadd.f32 %v739, %v871
  %v873 = vpop.f32.mrf.mxu0
  %874 = vmatprep.mubr.bf16.mxu0 0
  %875 = vmatmul.mubr.bf16.gmra.mxu0 %v809
  %v876 = vpop.f32.mrf.mxu0
  %v877 = vadd.f32 %v744, %v876
  %v878 = vpop.f32.mrf.mxu0
  %v879 = vpop.f32.mrf.mxu0
  %v880 = vadd.f32 %v747, %v879
  %v881 = vpop.f32.mrf.mxu0
  %882 = vmatprep.mubr.bf16.mxu0 0
  %883 = vmatmul.mubr.bf16.gmra.mxu0 %v812
  %v884 = vpop.f32.mrf.mxu0
  %v885 = vadd.f32 %v752, %v884
  %v886 = vpop.f32.mrf.mxu0
  %v887 = vpop.f32.mrf.mxu0
  %v888 = vadd.f32 %v755, %v887
  %v889 = vpop.f32.mrf.mxu0
  %890 = vmatprep.mubr.bf16.mxu0 0
  %891 = vmatmul.mubr.bf16.gmra.mxu0 %v815
  %v892 = vpop.f32.mrf.mxu0
  %v893 = vadd.f32 %v760, %v892
  %v894 = vpop.f32.mrf.mxu0
  %v895 = vpop.f32.mrf.mxu0
  %v896 = vadd.f32 %v763, %v895
  %v897 = vpop.f32.mrf.mxu0
  %898 = vmatprep.mubr.bf16.mxu0 0
  %899 = vmatmul.mubr.bf16.gmra.mxu0 %v818
  %v900 = vpop.f32.mrf.mxu0
  %v901 = vadd.f32 %v768, %v900
  %v902 = vpop.f32.mrf.mxu0
  %v903 = vpop.f32.mrf.mxu0
  %v904 = vadd.f32 %v771, %v903
  %v905 = vpop.f32.mrf.mxu0
  %906 = vmatprep.mubr.bf16.mxu0 0
  %907 = vmatmul.mubr.bf16.gmra.mxu0 %v821
  %v908 = vpop.f32.mrf.mxu0
  %v909 = vadd.f32 %v776, %v908
  %v910 = vpop.f32.mrf.mxu0
  %v911 = vpop.f32.mrf.mxu0
  %v912 = vadd.f32 %v779, %v911
  %v913 = vpop.f32.mrf.mxu0
  %914 = vmatprep.mubr.bf16.mxu0 0
  %915 = vmatmul.mubr.bf16.gmra.mxu0 %v824
  %v916 = vpop.f32.mrf.mxu0
  %v917 = vadd.f32 %v784, %v916
  %v918 = vpop.f32.mrf.mxu0
  %v919 = vpop.f32.mrf.mxu0
  %v920 = vadd.f32 %v787, %v919
  %v921 = vpop.f32.mrf.mxu0
  %922 = vdwg.mxu0
  %923 = vrot.lane.b32.xlu0 %v222, 32
  %v924 = vpop.permute.xlu0 %923
  %v926 = vadd.f32 %v861, %v924
  %v927 = vadd.f32 %v864, %v924
  %v928 = vadd.f32 %v869, %v924
  %v929 = vadd.f32 %v872, %v924
  %v930 = vadd.f32 %v877, %v924
  %v931 = vadd.f32 %v880, %v924
  %v932 = vadd.f32 %v885, %v924
  %v933 = vadd.f32 %v888, %v924
  %v934 = vadd.f32 %v893, %v924
  %v935 = vadd.f32 %v896, %v924
  %v936 = vadd.f32 %v901, %v924
  %v937 = vadd.f32 %v904, %v924
  %v938 = vadd.f32 %v909, %v924
  %v939 = vadd.f32 %v912, %v924
  %v940 = vadd.f32 %v917, %v924
  %v941 = vadd.f32 %v920, %v924
  %v942 = vmax.f32 %v926, 0.0
  %v943 = vmax.f32 %v927, 0.0
  %v944 = vmax.f32 %v928, 0.0
  %v945 = vmax.f32 %v929, 0.0
  %v946 = vmax.f32 %v930, 0.0
  %v947 = vmax.f32 %v931, 0.0
  %v948 = vmax.f32 %v932, 0.0
  %v949 = vmax.f32 %v933, 0.0
  %v950 = vmax.f32 %v934, 0.0
  %v951 = vmax.f32 %v935, 0.0
  %v952 = vmax.f32 %v936, 0.0
  %v953 = vmax.f32 %v937, 0.0
  %v954 = vmax.f32 %v938, 0.0
  %v955 = vmax.f32 %v939, 0.0
  %v956 = vmax.f32 %v940, 0.0
  %v957 = vmax.f32 %v941, 0.0
  %v958 = vld [vmem:[%s5 + $0x1] sm:$0x1]
  %v959 = vpack.c.bf16 %v958, %v958
  %v960 = vpack.c.bf16 %v943, %v942
  %v961 = vpack.c.bf16 %v945, %v944
  %v962 = vpack.c.bf16 %v947, %v946
  %v963 = vpack.c.bf16 %v949, %v948
  %v964 = vpack.c.bf16 %v951, %v950
  %v965 = vpack.c.bf16 %v953, %v952
  %v966 = vpack.c.bf16 %v955, %v954
  %v967 = vpack.c.bf16 %v957, %v956
  %969 = vset.pattern.permute.xlu0 32
  %970 = vperm.xlu0 %969, %v958
  %v971 = vpop.permute.xlu0 %970
  %v973 = vlaneseq
  %v974 = vshrl.u32 %v973, 7
  %v975 = vsub.s32 0, %v974
  %v976 = vrot.slane %v971, %v975
  %v978 = vsel %vm668, %v959, 0
  %v981 = vsel %vm668, %v960, 0
  %v984 = vsel %vm668, %v961, 0
  %v987 = vsel %vm668, %v962, 0
  %v990 = vsel %vm668, %v963, 0
  %v993 = vsel %vm668, %v964, 0
  %v996 = vsel %vm668, %v965, 0
  %v999 = vsel %vm668, %v966, 0
  %v1002 = vsel %vm668, %v967, 0
  %1004 = vmatprep.subr.bf16.mxu0 0
  %1005 = vmatpush1.bf16.xpose.msra.mxu0 %v1002
  %1006 = vmatprep.subr.bf16.mxu0 0
  %1007 = vmatpush1.bf16.xpose.msra.mxu0 %v999
  %1008 = vmatprep.subr.bf16.mxu0 0
  %1009 = vmatpush1.bf16.xpose.msra.mxu0 %v996
  %1010 = vmatprep.subr.bf16.mxu0 0
  %1011 = vmatpush1.bf16.xpose.msra.mxu0 %v993
  %1012 = vmatprep.subr.bf16.mxu0 0
  %1013 = vmatpush1.bf16.xpose.msra.mxu0 %v990
  %1014 = vmatprep.subr.bf16.mxu0 0
  %1015 = vmatpush1.bf16.xpose.msra.mxu0 %v987
  %1016 = vmatprep.subr.bf16.mxu0 0
  %1017 = vmatpush1.bf16.xpose.msra.mxu0 %v984
  %1018 = vmatprep.subr.bf16.mxu0 0
  %1019 = vmatpush1.bf16.xpose.msra.mxu0 %v981
  %1020 = vmatprep.subr.bf16.mxu0 0
  %1021 = vmatpush2.bf16.xpose.msra.mxu0 0
  %1022 = vmatprep.subr.bf16.mxu0 0
  %1023 = vmatpush2.bf16.xpose.msra.mxu0 0
  %1024 = vmatprep.subr.bf16.mxu0 0
  %1025 = vmatpush2.bf16.xpose.msra.mxu0 0
  %1026 = vmatprep.subr.bf16.mxu0 0
  %1027 = vmatpush2.bf16.xpose.msra.mxu0 0
  %1028 = vmatprep.subr.bf16.mxu0 0
  %1029 = vmatpush2.bf16.xpose.msra.mxu0 0
  %1030 = vmatprep.subr.bf16.mxu0 0
  %1031 = vmatpush2.bf16.xpose.msra.mxu0 0
  %1032 = vmatprep.subr.bf16.mxu0 0
  %1033 = vmatpush2.bf16.xpose.msra.mxu0 0
  %1034 = vmatprep.subr.bf16.mxu0 0
  %1035 = vmatpush2.bf16.xpose.msra.mxu0 0
  %1036 = vmatprep.mubr.bf16.mxu0 0
  %1037 = vmatmul.mubr.bf16.gmra.mxu0 %v978
  %v1038 = vpop.f32.mrf.mxu0
  %v1039 = vadd.f32 %v976, %v1038
  %v1040 = vpop.f32.mrf.mxu0
  %v1041 = vpop.f32.mrf.mxu0
  %v1042 = vpop.f32.mrf.mxu0
  %1043 = vdwg.mxu0
  %1044 = vst [vmem:[%s6] sm:$0x1] %v1039
  // Predicated region
  $region26: #{mlp_link_predictor_forward.1} parent=0 // pred_check
    _
  $region27: #{mlp_link_predictor_forward.1} parent=0 // pred_check_branch
    %1046 = sbr.rel (0) target = $region29
  $region28: #{mlp_link_predictor_forward.1} parent=0 // pred_region
    _
  $region29: #{mlp_link_predictor_forward.1} parent=0 // pred_fallthru
    _
  // Predicated region
  $region30: #{mlp_link_predictor_forward.1} parent=0 // pred_check
    _
  $region31: #{mlp_link_predictor_forward.1} parent=0 // pred_check_branch
    %1048 = sbr.rel (0) target = $region33
  $region32: #{mlp_link_predictor_forward.1} parent=0 // pred_region
    _
  $region33: #{mlp_link_predictor_forward.1} parent=0 // pred_fallthru
    _

</llo_original>
